<compile_context>
chip_gen: v7x
topology: tpu7x:2x2x1
jax: 0.10.0
libtpu: 0.0.40
codegen_flags: <defaults>
</compile_context>

<pallas_src>
import functools
import math

import numpy as np

import jax
import jax.numpy as jnp
from jax.experimental import pallas as pl
from jax.experimental.pallas import tpu as pltpu

LANE = 128   # lane width / feature padding
TN = 256     # node-row tile
TE = 512     # edge-row tile


def _round_up(x, m):
    return ((x + m - 1) // m) * m


def _pad2(a, rows, cols):
    return jnp.pad(a, ((0, rows - a.shape[0]), (0, cols - a.shape[1])))


def _vmem_limit_bytes():
    # Re-budget VMEM per generation: ~48 MiB on 64-MiB v7x, ~96 MiB on
    # 128-MiB v5e/v6e. Fall back conservatively if the query is unavailable.
    try:
        cap = int(pltpu.get_tpu_info().vmem_capacity_bytes)
    except Exception:
        cap = 64 * 1024 * 1024
    return int(min(cap * 3 // 4, 96 * 1024 * 1024))


_VMEM_LIMIT = _vmem_limit_bytes()


def _cparams(dim_sem):
    return pltpu.CompilerParams(dimension_semantics=dim_sem,
                                vmem_limit_bytes=_VMEM_LIMIT)


# --------------------------------------------------------------------------
# 1) RBF precompute (layer-invariant, computed once, bf16 output):
#    rbf[e, g] = exp(coeff * (dist[e] - offset[g])^2)
#    (dist kept as an (Eb,1) column: runs once per forward, low priority.)
# --------------------------------------------------------------------------
def rbf_kernel(dist_ref, off_ref, rbf_ref, *, coeff):
    d = dist_ref[...] - off_ref[...]                     # (TE, Gp) f32
    rbf_ref[...] = jnp.exp(coeff * d * d).astype(jnp.bfloat16)


def rbf_features(dist_pad, offsets_pad, coeff):
    Eb = dist_pad.shape[0]
    Gp = offsets_pad.shape[1]
    return pl.pallas_call(
        functools.partial(rbf_kernel, coeff=coeff),
        out_shape=jax.ShapeDtypeStruct((Eb, Gp), jnp.bfloat16),
        grid=(Eb // TE,),
        in_specs=[pl.BlockSpec((TE, 1), lambda j: (j, 0)),
                  pl.BlockSpec((1, Gp), lambda j: (0, 0))],
        out_specs=pl.BlockSpec((TE, Gp), lambda j: (j, 0)),
        compiler_params=_cparams(("parallel",)),
    )(dist_pad, offsets_pad)


# --------------------------------------------------------------------------
# 2) Node linear: h = X @ W_in + b_in   (tiled over node rows, bf16 output)
# --------------------------------------------------------------------------
def linear_kernel(x_ref, w_ref, b_ref, o_ref):
    x = x_ref[...].astype(jnp.bfloat16)
    h = jnp.dot(x, w_ref[...], preferred_element_type=jnp.float32) + b_ref[...]
    o_ref[...] = h.astype(jnp.bfloat16)


def node_linear(x_pad, w_bf16, b_f32):
    Npad, Dp = x_pad.shape
    Hp = w_bf16.shape[1]
    return pl.pallas_call(
        linear_kernel,
        out_shape=jax.ShapeDtypeStruct((Npad, Hp), jnp.bfloat16),
        grid=(Npad // TN,),
        in_specs=[pl.BlockSpec((TN, Dp), lambda i: (i, 0)),
                  pl.BlockSpec((Dp, Hp), lambda i: (0, 0)),
                  pl.BlockSpec((1, Hp), lambda i: (0, 0))],
        out_specs=pl.BlockSpec((TN, Hp), lambda i: (i, 0)),
        compiler_params=_cparams(("parallel",)),
    )(x_pad, w_bf16, b_f32)


# --------------------------------------------------------------------------
# 3) Per-edge message: msg = h[node_in] * (rbf @ W_rbf + b_rbf)
#    (tiled over edge rows; rbf reused across layers; bf16 in, bf16 out)
# --------------------------------------------------------------------------
def message_kernel(rbf_ref, h_in_ref, w_rbf_ref, b_rbf_ref, msg_ref):
    w = (jnp.dot(rbf_ref[...], w_rbf_ref[...],
                 preferred_element_type=jnp.float32) + b_rbf_ref[...])
    msg_ref[...] = (h_in_ref[...].astype(jnp.float32) * w).astype(jnp.bfloat16)


def message_features(rbf, h_in, w_rbf, b_rbf):
    Eb, Gp = rbf.shape
    Hp = w_rbf.shape[1]
    return pl.pallas_call(
        message_kernel,
        out_shape=jax.ShapeDtypeStruct((Eb, Hp), jnp.bfloat16),
        grid=(Eb // TE,),
        in_specs=[pl.BlockSpec((TE, Gp), lambda j: (j, 0)),
                  pl.BlockSpec((TE, Hp), lambda j: (j, 0)),
                  pl.BlockSpec((Gp, Hp), lambda j: (0, 0)),
                  pl.BlockSpec((1, Hp), lambda j: (0, 0))],
        out_specs=pl.BlockSpec((TE, Hp), lambda j: (j, 0)),
        compiler_params=_cparams(("parallel",)),
    )(rbf, h_in, w_rbf, b_rbf)


# --------------------------------------------------------------------------
# 4) CSR-bucketed scatter-add over node_out (weighted bf16 one-hot matmul)
#    + output linear + shifted softplus [+ residual].
#    Grid = 1-D over bucketed edge tiles; the target node tile and the
#    per-bucket init/finalize flags come from scalar-prefetched SMEM arrays.
#    TODO(synk): pipeline_mode=pl.Buffered(3) on the msg spec for v5e.
# --------------------------------------------------------------------------
def scatter_combine_kernel(tile_ref, first_ref, last_ref,
                           msg_ref, nout_ref, ew_ref, x_ref,
                           w_out_ref, b_out_ref, o_ref,
                           acc_ref, iota_ref, *, use_residual):
    j = pl.program_id(0)
    tn = acc_ref.shape[0]

    @pl.when(j == 0)
    def _():
        # Grid-invariant local-row iota, cached in VMEM (hoisted mask bookkeeping).
        iota_ref[...] = jax.lax.broadcasted_iota(jnp.int32, iota_ref.shape, 0)

    @pl.when(first_ref[j] == 1)
    def _():
        acc_ref[...] = jnp.zeros_like(acc_ref)

    # g[n, e] = edge_weight[e] (bf16) if node_out[e] lands on local row n of
    # this node tile else 0.  Padded edges have edge_weight == 0 -> no effect.
    tile_base = tile_ref[j] * tn
    local = nout_ref[...] - tile_base                     # (1, TE) int32
    g = jnp.where(local == iota_ref[...], ew_ref[...],
                  jnp.zeros_like(ew_ref[...]))            # (TN, TE) bf16
    acc_ref[...] += jnp.dot(g, msg_ref[...],
                            preferred_element_type=jnp.float32)   # (TN, Hp) f32

    @pl.when(last_ref[j] == 1)
    def _():
        z = (jnp.dot(acc_ref[...].astype(jnp.bfloat16), w_out_ref[...],
                     preferred_element_type=jnp.float32) + b_out_ref[...])
        # shifted softplus: softplus(z) - log(2)
        out = (jnp.maximum(z, 0.0)
               + jnp.log(1.0 + jnp.exp(-jnp.abs(z)))
               - math.log(2.0))
        if use_residual:
            out = out + x_ref[...]
        o_ref[...] = out


def scatter_combine(msg, nout_row, ew_row, tile_of, first, last,
                    x_res, w_out, b_out, use_residual):
    Eb, Hp = msg.shape
    Npad, Dxp = x_res.shape
    Dout_p = w_out.shape[1]
    n_tiles = Eb // TE
    kernel = functools.partial(scatter_combine_kernel, use_residual=use_residual)
    return pl.pallas_call(
        kernel,
        out_shape=jax.ShapeDtypeStruct((Npad, Dout_p), jnp.float32),
        grid_spec=pltpu.PrefetchScalarGridSpec(
            num_scalar_prefetch=3,
            grid=(n_tiles,),
            in_specs=[
                pl.BlockSpec((TE, Hp), lambda j, t, f, l: (j, 0)),      # msg (bf16)
                pl.BlockSpec((1, TE), lambda j, t, f, l: (0, j)),       # node_out
                pl.BlockSpec((1, TE), lambda j, t, f, l: (0, j)),       # edge_weight (bf16)
                pl.BlockSpec((TN, Dxp), lambda j, t, f, l: (t[j], 0)),  # residual input
                pl.BlockSpec((Hp, Dout_p), lambda j, t, f, l: (0, 0)),  # W_out
                pl.BlockSpec((1, Dout_p), lambda j, t, f, l: (0, 0)),   # b_out
            ],
            out_specs=pl.BlockSpec((TN, Dout_p), lambda j, t, f, l: (t[j], 0)),
            scratch_shapes=[pltpu.VMEM((TN, Hp), jnp.float32),
                            pltpu.VMEM((TN, TE), jnp.int32)],
        ),
        compiler_params=_cparams(("arbitrary",)),
    )(tile_of, first, last, msg, nout_row, ew_row, x_res, w_out, b_out)


# --------------------------------------------------------------------------
# Host-side CSR edge bucketing (layer-invariant).
# Edges are grouped by target node tile; each bucket is zero-padded to a
# multiple of TE (>= 1 tile so every output block gets finalized).
# TODO(synk): make this jit-friendly (static max bucket sizes) for dynamic graphs.
# --------------------------------------------------------------------------
def build_edge_buckets(node_in, node_out, edge_weight, Npad):
    node_in = np.asarray(node_in, np.int32)
    node_out = np.asarray(node_out, np.int32)
    ew = np.asarray(edge_weight, np.float32).reshape(-1)
    num_node_tiles = Npad // TN
    tile_of_edge = node_out // TN

    nin_b, nout_b, ew_b = [], [], []
    tile_ids, first, last = [], [], []
    for t in range(num_node_tiles):
        sel = np.nonzero(tile_of_edge == t)[0]
        cnt = int(sel.shape[0])
        n_etiles = max(1, -(-cnt // TE))
        padded = n_etiles * TE
        bi = np.zeros((padded,), np.int32)
        bo = np.zeros((padded,), np.int32)
        bw = np.zeros((padded,), np.float32)
        bi[:cnt] = node_in[sel]
        bo[:cnt] = node_out[sel]
        bw[:cnt] = ew[sel]
        nin_b.append(bi)
        nout_b.append(bo)
        ew_b.append(bw)
        tile_ids += [t] * n_etiles
        first += [1] + [0] * (n_etiles - 1)
        last += [0] * (n_etiles - 1) + [1]

    return (jnp.asarray(np.concatenate(nin_b)),
            jnp.asarray(np.concatenate(nout_b)),
            jnp.asarray(np.concatenate(ew_b)),
            jnp.asarray(np.asarray(tile_ids, np.int32)),
            jnp.asarray(np.asarray(first, np.int32)),
            jnp.asarray(np.asarray(last, np.int32)))


# --------------------------------------------------------------------------
# Parameters (nn.Linear shapes, pre-transposed, zero-padded to lane multiples,
# weights stored in bf16, biases in f32).
# --------------------------------------------------------------------------
def init_schnet_params(key, input_dim, hidden_dims, num_gaussian):
    dims = [input_dim] + list(hidden_dims)
    Gp = _round_up(num_gaussian, LANE)
    layers = []
    for i in range(len(dims) - 1):
        din, dout = dims[i], dims[i + 1]
        hidden = dout  # ContinuousFilterConv default: hidden_dim = output_dim
        dp_in, hp, dp_out = (_round_up(din, LANE), _round_up(hidden, LANE),
                             _round_up(dout, LANE))
        key, k1, k2, k3, k4, k5, k6 = jax.random.split(key, 7)
        w_in = jax.random.normal(k1, (din, hidden), jnp.float32) / math.sqrt(din)
        b_in = jax.random.normal(k2, (1, hidden), jnp.float32) * 0.01
        w_rbf = jax.random.normal(k3, (num_gaussian, hidden), jnp.float32) / math.sqrt(num_gaussian)
        b_rbf = jax.random.normal(k4, (1, hidden), jnp.float32) * 0.01
        w_out = jax.random.normal(k5, (hidden, dout), jnp.float32) / math.sqrt(hidden)
        b_out = jax.random.normal(k6, (1, dout), jnp.float32) * 0.01
        layers.append({
            "din": din, "dout": dout,
            "w_in": _pad2(w_in, dp_in, hp).astype(jnp.bfloat16),
            "b_in": _pad2(b_in, 1, hp),
            "w_rbf": _pad2(w_rbf, Gp, hp).astype(jnp.bfloat16),
            "b_rbf": _pad2(b_rbf, 1, hp),
            "w_out": _pad2(w_out, hp, dp_out).astype(jnp.bfloat16),
            "b_out": _pad2(b_out, 1, dp_out),
        })
    return layers


# --------------------------------------------------------------------------
# SchNet forward
# --------------------------------------------------------------------------
def schnet_forward(layers_params, edge_list, edge_weight, node_position, x,
                   offsets, coeff, short_cut=True, concat_hidden=False):
    N, input_dim = x.shape
    G = offsets.shape[-1]

    Npad = _round_up(N, TN)
    Gp = _round_up(G, LANE)
    Dp0 = _round_up(input_dim, LANE)

    node_in = jnp.asarray(edge_list)[:, 0].astype(jnp.int32)
    node_out = jnp.asarray(edge_list)[:, 1].astype(jnp.int32)

    # ---- layer-invariant CSR bucketing + geometry + RBF (computed once) ----
    nin_b, nout_b, ew_b, tile_of, first, last = build_edge_buckets(
        node_in, node_out, edge_weight, Npad)
    Eb = int(nin_b.shape[0])

    nout_row = nout_b.reshape(1, Eb)                               # lane-dense int32
    ew_row = ew_b.astype(jnp.bfloat16).reshape(1, Eb)              # lane-dense bf16

    diff = node_position[nin_b] - node_position[nout_b]            # (Eb, 3)
    dist = jnp.sqrt(jnp.sum(diff * diff, axis=-1, keepdims=True))  # (Eb, 1)
    offsets_pad = jnp.pad(offsets.astype(jnp.float32).reshape(1, -1),
                          ((0, 0), (0, Gp - G)))
    rbf = rbf_features(dist, offsets_pad, coeff)                   # (Eb, Gp) bf16

    layer_input = jnp.pad(x.astype(jnp.float32),
                          ((0, Npad - N), (0, Dp0 - input_dim)))
    real_dim = input_dim
    hiddens, real_dims = [], []
    for p in layers_params:
        use_residual = short_cut and (p["dout"] == real_dim)
        h = node_linear(layer_input, p["w_in"], p["b_in"])         # (Npad, Hp) bf16
        # TODO(synk): fold this row-gather into the message/scatter kernel
        # (VMEM-resident h or DMA gather); done in bf16 to halve its HBM traffic.
        h_in = jnp.take(h, nin_b, axis=0)                          # (Eb, Hp) bf16
        msg = message_features(rbf, h_in, p["w_rbf"], p["b_rbf"])  # (Eb, Hp) bf16
        out = scatter_combine(msg, nout_row, ew_row, tile_of, first, last,
                              layer_input, p["w_out"], p["b_out"],
                              use_residual)                        # (Npad, Dout_p) f32
        hiddens.append(out)
        real_dims.append(p["dout"])
        layer_input = out
        real_dim = p["dout"]

    if concat_hidden:
        node_feature = jnp.concatenate(
            [h[:N, :d] for h, d in zip(hiddens, real_dims)], axis=-1)
    else:
        node_feature = hiddens[-1][:N, :real_dims[-1]]
    return {"node_feature": node_feature}


if __name__ == "__main__":
    # Small synthetic graph, consistent with SchNet(input_dim, hidden_dims, ...).
    N, E = 8, 16                 # nodes, edges
    input_dim = 16
    hidden_dims = [32, 32]
    num_gaussian = 16
    cutoff = 5.0

    key = jax.random.PRNGKey(0)
    k_x, k_pos, k_el, k_ew, k_par = jax.random.split(key, 5)

    x = jax.random.normal(k_x, (N, input_dim), jnp.float32)
    node_position = jax.random.normal(k_pos, (N, 3), jnp.float32) * 2.0
    edge_list = jax.random.randint(k_el, (E, 2), 0, N, jnp.int32)
    edge_weight = jax.random.uniform(k_ew, (E,), jnp.float32, 0.5, 1.5)

    # RBF (Gaussian smearing): offsets linspace(0, cutoff, G), coeff = -0.5/delta^2
    offsets = jnp.linspace(0.0, cutoff, num_gaussian).astype(jnp.float32).reshape(1, -1)
    delta = cutoff / (num_gaussian - 1)
    coeff = float(-0.5 / (delta ** 2))

    params = init_schnet_params(k_par, input_dim, hidden_dims, num_gaussian)

    out = schnet_forward(params, edge_list, edge_weight, node_position, x,
                         offsets, coeff, short_cut=True, concat_hidden=False)
    node_feature = jax.block_until_ready(out["node_feature"])
    assert node_feature.shape == (N, hidden_dims[-1])
    assert bool(jnp.all(jnp.isfinite(node_feature)))
    print("KERNEL_OK")
</pallas_src>

<mosaic_0001>
module attributes {stable_mosaic.version = 11 : i64} {
  func.func @rbf_kernel(%arg0: i32, %arg1: memref<512x1xf32, #tpu.memory_space<vmem>>, %arg2: memref<1x128xf32, #tpu.memory_space<vmem>>, %arg3: memref<512x128xbf16, #tpu.memory_space<vmem>>) attributes {dimension_semantics = [#tpu.dimension_semantics<parallel>], iteration_bounds = array<i64: 1>, scalar_prefetch = 0 : i64, scratch_operands = 0 : i64, tpu.core_type = #tpu.core_type<tc>, window_params = [{transform_indices = @transform_0, window_bounds = array<i64: 512, 1>}, {pipeline_mode = #tpu.pipeline_mode<synchronous>, transform_indices = @transform_1, window_bounds = array<i64: 1, 128>}, {transform_indices = @transform_2, window_bounds = array<i64: 512, 128>}]} {
    %c0 = arith.constant 0 : index
    %c0_0 = arith.constant 0 : index
    %0 = vector.load %arg1[%c0, %c0_0] : memref<512x1xf32, #tpu.memory_space<vmem>>, vector<512x1xf32>
    %c0_1 = arith.constant 0 : index
    %c0_2 = arith.constant 0 : index
    %1 = vector.load %arg2[%c0_1, %c0_2] : memref<1x128xf32, #tpu.memory_space<vmem>>, vector<1x128xf32>
    %2 = vector.broadcast %0 : vector<512x1xf32> to vector<512x128xf32>
    %3 = vector.broadcast %1 : vector<1x128xf32> to vector<512x128xf32>
    %4 = arith.subf %2, %3 : vector<512x128xf32>
    %cst = arith.constant -4.500000e+00 : f32
    %5 = vector.broadcast %cst : f32 to vector<512x128xf32>
    %6 = arith.mulf %5, %4 : vector<512x128xf32>
    %7 = arith.mulf %6, %4 : vector<512x128xf32>
    %8 = math.exp %7 : vector<512x128xf32>
    %9 = arith.truncf %8 : vector<512x128xf32> to vector<512x128xbf16>
    %c0_3 = arith.constant 0 : index
    %c0_4 = arith.constant 0 : index
    %10 = vector.load %arg3[%c0_3, %c0_4] : memref<512x128xbf16, #tpu.memory_space<vmem>>, vector<512x128xbf16>
    tpu.vector_store %arg3[%c0_3, %c0_4], %9 {strides = array<i32>} : memref<512x128xbf16, #tpu.memory_space<vmem>>, vector<512x128xbf16>,
    return
  }
  func.func @transform_0(%arg0: i32) -> (i32, i32) {
    %c0_i32 = arith.constant 0 : i32
    %c0_i32_0 = arith.constant 0 : i32
    return %arg0, %c0_i32 : i32, i32
  }
  func.func @transform_1(%arg0: i32) -> (i32, i32) {
    %c0_i32 = arith.constant 0 : i32
    %c0_i32_0 = arith.constant 0 : i32
    %c0_i32_1 = arith.constant 0 : i32
    return %c0_i32, %c0_i32_0 : i32, i32
  }
  func.func @transform_2(%arg0: i32) -> (i32, i32) {
    %c0_i32 = arith.constant 0 : i32
    %c0_i32_0 = arith.constant 0 : i32
    return %arg0, %c0_i32 : i32, i32
  }
}

</mosaic_0001>

<llo_original>
// kernel: tpu_custom_call.1
$region0: #{tpu_custom_call.1}
  #allocation0 [shape = 'u32[]', space=smem, size = 0x4, offset = 0x4, fixed_abs, tag = 'smem constant byte address 0x4 - core index']
  #allocation1 [shape = 'u32[144,128]{1,0:T(1,128)}', space=vmem, size = 0x12000, scoped, tag = 'internal scratch']
  %s0 = inlined_call_operand.vmem [shape: f32[512,1], index: 0, kind: input, shape index: {}]
  %s1 = inlined_call_operand.vmem [shape: f32[1,128], index: 1, kind: input, shape index: {}]
  %s2 = inlined_call_operand.hbm [shape: bf16[512,128], index: 2, kind: output, shape index: {}]
  %s3 = sld [smem:[#allocation0]]
  $region18: #{tpu_custom_call.1} parent=0
    _
  %s5 = ssub.s32 1, %s3
  %s6 = scalar_select 0, %s5, %s3
  $region1: #{tpu_custom_call.1} parent=0
    #allocation2 [shape = 'u8[131072]{0}', space=vmem, size = 0x20000, scoped, tag = 'output window, operand 0, single buffered']
    #allocation3 [shape = 's32[1]{0}', space=sflag, size = 0x4, scoped, tag = 'scoped memory for tpu_custom_call.1']
    %7 = vsyncpa [#allocation3], 0
    // Predicated region
    $region2: #{tpu_custom_call.1} parent=1 // pred_check
      _
    $region3: #{tpu_custom_call.1} parent=1 // pred_check_branch
      %9 = sbr.rel (0) target = $region5
    $region4: #{tpu_custom_call.1} parent=1 // pred_region
      _
    $region5: #{tpu_custom_call.1} parent=1 // pred_fallthru
      _
    // Predicated region
    $region6: #{tpu_custom_call.1} parent=1 // pred_check
      _
    $region7: #{tpu_custom_call.1} parent=1 // pred_check_branch
      %11 = sbr.rel (0) target = $region9
    $region8: #{tpu_custom_call.1} parent=1 // pred_region
      _
    $region9: #{tpu_custom_call.1} parent=1 // pred_fallthru
      _
    %v12 = vld [vmem:[%s0] sm:$0xff]
    %v13 = vld [vmem:[%s0 + $0x8] sm:$0xff]
    %v14 = vld [vmem:[%s0 + $0x10] sm:$0xff]
    %v15 = vld [vmem:[%s0 + $0x18] sm:$0xff]
    %v16 = vld [vmem:[%s0 + $0x20] sm:$0xff]
    %v17 = vld [vmem:[%s0 + $0x28] sm:$0xff]
    %v18 = vld [vmem:[%s0 + $0x30] sm:$0xff]
    %v19 = vld [vmem:[%s0 + $0x38] sm:$0xff]
    %v20 = vld [vmem:[%s0 + $0x40] sm:$0xff]
    %v21 = vld [vmem:[%s0 + $0x48] sm:$0xff]
    %v22 = vld [vmem:[%s0 + $0x50] sm:$0xff]
    %v23 = vld [vmem:[%s0 + $0x58] sm:$0xff]
    %v24 = vld [vmem:[%s0 + $0x60] sm:$0xff]
    %v25 = vld [vmem:[%s0 + $0x68] sm:$0xff]
    %v26 = vld [vmem:[%s0 + $0x70] sm:$0xff]
    %v27 = vld [vmem:[%s0 + $0x78] sm:$0xff]
    %v28 = vld [vmem:[%s0 + $0x80] sm:$0xff]
    %v29 = vld [vmem:[%s0 + $0x88] sm:$0xff]
    %v30 = vld [vmem:[%s0 + $0x90] sm:$0xff]
    %v31 = vld [vmem:[%s0 + $0x98] sm:$0xff]
    %v32 = vld [vmem:[%s0 + $0xa0] sm:$0xff]
    %v33 = vld [vmem:[%s0 + $0xa8] sm:$0xff]
    %v34 = vld [vmem:[%s0 + $0xb0] sm:$0xff]
    %v35 = vld [vmem:[%s0 + $0xb8] sm:$0xff]
    %v36 = vld [vmem:[%s0 + $0xc0] sm:$0xff]
    %v37 = vld [vmem:[%s0 + $0xc8] sm:$0xff]
    %v38 = vld [vmem:[%s0 + $0xd0] sm:$0xff]
    %v39 = vld [vmem:[%s0 + $0xd8] sm:$0xff]
    %v40 = vld [vmem:[%s0 + $0xe0] sm:$0xff]
    %v41 = vld [vmem:[%s0 + $0xe8] sm:$0xff]
    %v42 = vld [vmem:[%s0 + $0xf0] sm:$0xff]
    %v43 = vld [vmem:[%s0 + $0xf8] sm:$0xff]
    %v44 = vld [vmem:[%s0 + $0x100] sm:$0xff]
    %v45 = vld [vmem:[%s0 + $0x108] sm:$0xff]
    %v46 = vld [vmem:[%s0 + $0x110] sm:$0xff]
    %v47 = vld [vmem:[%s0 + $0x118] sm:$0xff]
    %v48 = vld [vmem:[%s0 + $0x120] sm:$0xff]
    %v49 = vld [vmem:[%s0 + $0x128] sm:$0xff]
    %v50 = vld [vmem:[%s0 + $0x130] sm:$0xff]
    %v51 = vld [vmem:[%s0 + $0x138] sm:$0xff]
    %v52 = vld [vmem:[%s0 + $0x140] sm:$0xff]
    %v53 = vld [vmem:[%s0 + $0x148] sm:$0xff]
    %v54 = vld [vmem:[%s0 + $0x150] sm:$0xff]
    %v55 = vld [vmem:[%s0 + $0x158] sm:$0xff]
    %v56 = vld [vmem:[%s0 + $0x160] sm:$0xff]
    %v57 = vld [vmem:[%s0 + $0x168] sm:$0xff]
    %v58 = vld [vmem:[%s0 + $0x170] sm:$0xff]
    %v59 = vld [vmem:[%s0 + $0x178] sm:$0xff]
    %v60 = vld [vmem:[%s0 + $0x180] sm:$0xff]
    %v61 = vld [vmem:[%s0 + $0x188] sm:$0xff]
    %v62 = vld [vmem:[%s0 + $0x190] sm:$0xff]
    %v63 = vld [vmem:[%s0 + $0x198] sm:$0xff]
    %v64 = vld [vmem:[%s0 + $0x1a0] sm:$0xff]
    %v65 = vld [vmem:[%s0 + $0x1a8] sm:$0xff]
    %v66 = vld [vmem:[%s0 + $0x1b0] sm:$0xff]
    %v67 = vld [vmem:[%s0 + $0x1b8] sm:$0xff]
    %v68 = vld [vmem:[%s0 + $0x1c0] sm:$0xff]
    %v69 = vld [vmem:[%s0 + $0x1c8] sm:$0xff]
    %v70 = vld [vmem:[%s0 + $0x1d0] sm:$0xff]
    %v71 = vld [vmem:[%s0 + $0x1d8] sm:$0xff]
    %v72 = vld [vmem:[%s0 + $0x1e0] sm:$0xff]
    %v73 = vld [vmem:[%s0 + $0x1e8] sm:$0xff]
    %v74 = vld [vmem:[%s0 + $0x1f0] sm:$0xff]
    %v75 = vld [vmem:[%s0 + $0x1f8] sm:$0xff]
    %v76 = vld [vmem:[%s1] sm:$0x1]
    %78 = vset.pattern.permute.xlu0 0
    %79 = vperm.xlu0 %78, %v12
    %v80 = vpop.permute.xlu0 %79
    %83 = vset.pattern.permute.xlu0 0
    %84 = vperm.xlu0 %83, %v13
    %v85 = vpop.permute.xlu0 %84
    %88 = vset.pattern.permute.xlu0 0
    %89 = vperm.xlu0 %88, %v14
    %v90 = vpop.permute.xlu0 %89
    %93 = vset.pattern.permute.xlu0 0
    %94 = vperm.xlu0 %93, %v15
    %v95 = vpop.permute.xlu0 %94
    %98 = vset.pattern.permute.xlu0 0
    %99 = vperm.xlu0 %98, %v16
    %v100 = vpop.permute.xlu0 %99
    %103 = vset.pattern.permute.xlu0 0
    %104 = vperm.xlu0 %103, %v17
    %v105 = vpop.permute.xlu0 %104
    %108 = vset.pattern.permute.xlu0 0
    %109 = vperm.xlu0 %108, %v18
    %v110 = vpop.permute.xlu0 %109
    %113 = vset.pattern.permute.xlu0 0
    %114 = vperm.xlu0 %113, %v19
    %v115 = vpop.permute.xlu0 %114
    %118 = vset.pattern.permute.xlu0 0
    %119 = vperm.xlu0 %118, %v20
    %v120 = vpop.permute.xlu0 %119
    %123 = vset.pattern.permute.xlu0 0
    %124 = vperm.xlu0 %123, %v21
    %v125 = vpop.permute.xlu0 %124
    %128 = vset.pattern.permute.xlu0 0
    %129 = vperm.xlu0 %128, %v22
    %v130 = vpop.permute.xlu0 %129
    %133 = vset.pattern.permute.xlu0 0
    %134 = vperm.xlu0 %133, %v23
    %v135 = vpop.permute.xlu0 %134
    %138 = vset.pattern.permute.xlu0 0
    %139 = vperm.xlu0 %138, %v24
    %v140 = vpop.permute.xlu0 %139
    %143 = vset.pattern.permute.xlu0 0
    %144 = vperm.xlu0 %143, %v25
    %v145 = vpop.permute.xlu0 %144
    %148 = vset.pattern.permute.xlu0 0
    %149 = vperm.xlu0 %148, %v26
    %v150 = vpop.permute.xlu0 %149
    %153 = vset.pattern.permute.xlu0 0
    %154 = vperm.xlu0 %153, %v27
    %v155 = vpop.permute.xlu0 %154
    %158 = vset.pattern.permute.xlu0 0
    %159 = vperm.xlu0 %158, %v28
    %v160 = vpop.permute.xlu0 %159
    %163 = vset.pattern.permute.xlu0 0
    %164 = vperm.xlu0 %163, %v29
    %v165 = vpop.permute.xlu0 %164
    %168 = vset.pattern.permute.xlu0 0
    %169 = vperm.xlu0 %168, %v30
    %v170 = vpop.permute.xlu0 %169
    %173 = vset.pattern.permute.xlu0 0
    %174 = vperm.xlu0 %173, %v31
    %v175 = vpop.permute.xlu0 %174
    %178 = vset.pattern.permute.xlu0 0
    %179 = vperm.xlu0 %178, %v32
    %v180 = vpop.permute.xlu0 %179
    %183 = vset.pattern.permute.xlu0 0
    %184 = vperm.xlu0 %183, %v33
    %v185 = vpop.permute.xlu0 %184
    %188 = vset.pattern.permute.xlu0 0
    %189 = vperm.xlu0 %188, %v34
    %v190 = vpop.permute.xlu0 %189
    %193 = vset.pattern.permute.xlu0 0
    %194 = vperm.xlu0 %193, %v35
    %v195 = vpop.permute.xlu0 %194
    %198 = vset.pattern.permute.xlu0 0
    %199 = vperm.xlu0 %198, %v36
    %v200 = vpop.permute.xlu0 %199
    %203 = vset.pattern.permute.xlu0 0
    %204 = vperm.xlu0 %203, %v37
    %v205 = vpop.permute.xlu0 %204
    %208 = vset.pattern.permute.xlu0 0
    %209 = vperm.xlu0 %208, %v38
    %v210 = vpop.permute.xlu0 %209
    %213 = vset.pattern.permute.xlu0 0
    %214 = vperm.xlu0 %213, %v39
    %v215 = vpop.permute.xlu0 %214
    %218 = vset.pattern.permute.xlu0 0
    %219 = vperm.xlu0 %218, %v40
    %v220 = vpop.permute.xlu0 %219
    %223 = vset.pattern.permute.xlu0 0
    %224 = vperm.xlu0 %223, %v41
    %v225 = vpop.permute.xlu0 %224
    %228 = vset.pattern.permute.xlu0 0
    %229 = vperm.xlu0 %228, %v42
    %v230 = vpop.permute.xlu0 %229
    %233 = vset.pattern.permute.xlu0 0
    %234 = vperm.xlu0 %233, %v43
    %v235 = vpop.permute.xlu0 %234
    %238 = vset.pattern.permute.xlu0 0
    %239 = vperm.xlu0 %238, %v44
    %v240 = vpop.permute.xlu0 %239
    %243 = vset.pattern.permute.xlu0 0
    %244 = vperm.xlu0 %243, %v45
    %v245 = vpop.permute.xlu0 %244
    %248 = vset.pattern.permute.xlu0 0
    %249 = vperm.xlu0 %248, %v46
    %v250 = vpop.permute.xlu0 %249
    %253 = vset.pattern.permute.xlu0 0
    %254 = vperm.xlu0 %253, %v47
    %v255 = vpop.permute.xlu0 %254
    %258 = vset.pattern.permute.xlu0 0
    %259 = vperm.xlu0 %258, %v48
    %v260 = vpop.permute.xlu0 %259
    %263 = vset.pattern.permute.xlu0 0
    %264 = vperm.xlu0 %263, %v49
    %v265 = vpop.permute.xlu0 %264
    %268 = vset.pattern.permute.xlu0 0
    %269 = vperm.xlu0 %268, %v50
    %v270 = vpop.permute.xlu0 %269
    %273 = vset.pattern.permute.xlu0 0
    %274 = vperm.xlu0 %273, %v51
    %v275 = vpop.permute.xlu0 %274
    %278 = vset.pattern.permute.xlu0 0
    %279 = vperm.xlu0 %278, %v52
    %v280 = vpop.permute.xlu0 %279
    %283 = vset.pattern.permute.xlu0 0
    %284 = vperm.xlu0 %283, %v53
    %v285 = vpop.permute.xlu0 %284
    %288 = vset.pattern.permute.xlu0 0
    %289 = vperm.xlu0 %288, %v54
    %v290 = vpop.permute.xlu0 %289
    %293 = vset.pattern.permute.xlu0 0
    %294 = vperm.xlu0 %293, %v55
    %v295 = vpop.permute.xlu0 %294
    %298 = vset.pattern.permute.xlu0 0
    %299 = vperm.xlu0 %298, %v56
    %v300 = vpop.permute.xlu0 %299
    %303 = vset.pattern.permute.xlu0 0
    %304 = vperm.xlu0 %303, %v57
    %v305 = vpop.permute.xlu0 %304
    %308 = vset.pattern.permute.xlu0 0
    %309 = vperm.xlu0 %308, %v58
    %v310 = vpop.permute.xlu0 %309
    %313 = vset.pattern.permute.xlu0 0
    %314 = vperm.xlu0 %313, %v59
    %v315 = vpop.permute.xlu0 %314
    %318 = vset.pattern.permute.xlu0 0
    %319 = vperm.xlu0 %318, %v60
    %v320 = vpop.permute.xlu0 %319
    %323 = vset.pattern.permute.xlu0 0
    %324 = vperm.xlu0 %323, %v61
    %v325 = vpop.permute.xlu0 %324
    %328 = vset.pattern.permute.xlu0 0
    %329 = vperm.xlu0 %328, %v62
    %v330 = vpop.permute.xlu0 %329
    %333 = vset.pattern.permute.xlu0 0
    %334 = vperm.xlu0 %333, %v63
    %v335 = vpop.permute.xlu0 %334
    %338 = vset.pattern.permute.xlu0 0
    %339 = vperm.xlu0 %338, %v64
    %v340 = vpop.permute.xlu0 %339
    %343 = vset.pattern.permute.xlu0 0
    %344 = vperm.xlu0 %343, %v65
    %v345 = vpop.permute.xlu0 %344
    %348 = vset.pattern.permute.xlu0 0
    %349 = vperm.xlu0 %348, %v66
    %v350 = vpop.permute.xlu0 %349
    %353 = vset.pattern.permute.xlu0 0
    %354 = vperm.xlu0 %353, %v67
    %v355 = vpop.permute.xlu0 %354
    %358 = vset.pattern.permute.xlu0 0
    %359 = vperm.xlu0 %358, %v68
    %v360 = vpop.permute.xlu0 %359
    %363 = vset.pattern.permute.xlu0 0
    %364 = vperm.xlu0 %363, %v69
    %v365 = vpop.permute.xlu0 %364
    %368 = vset.pattern.permute.xlu0 0
    %369 = vperm.xlu0 %368, %v70
    %v370 = vpop.permute.xlu0 %369
    %373 = vset.pattern.permute.xlu0 0
    %374 = vperm.xlu0 %373, %v71
    %v375 = vpop.permute.xlu0 %374
    %378 = vset.pattern.permute.xlu0 0
    %379 = vperm.xlu0 %378, %v72
    %v380 = vpop.permute.xlu0 %379
    %383 = vset.pattern.permute.xlu0 0
    %384 = vperm.xlu0 %383, %v73
    %v385 = vpop.permute.xlu0 %384
    %388 = vset.pattern.permute.xlu0 0
    %389 = vperm.xlu0 %388, %v74
    %v390 = vpop.permute.xlu0 %389
    %393 = vset.pattern.permute.xlu0 0
    %394 = vperm.xlu0 %393, %v75
    %v395 = vpop.permute.xlu0 %394
    %v398 = vlaneseq
    %v399 = vshrl.u32 %v398, 7
    %v400 = vsub.s32 0, %v399
    %v401 = vrot.slane %v76, %v400
    %v403 = vsub.f32 %v80, %v401
    %v404 = vsub.f32 %v85, %v401
    %v405 = vsub.f32 %v90, %v401
    %v406 = vsub.f32 %v95, %v401
    %v407 = vsub.f32 %v100, %v401
    %v408 = vsub.f32 %v105, %v401
    %v409 = vsub.f32 %v110, %v401
    %v410 = vsub.f32 %v115, %v401
    %v411 = vsub.f32 %v120, %v401
    %v412 = vsub.f32 %v125, %v401
    %v413 = vsub.f32 %v130, %v401
    %v414 = vsub.f32 %v135, %v401
    %v415 = vsub.f32 %v140, %v401
    %v416 = vsub.f32 %v145, %v401
    %v417 = vsub.f32 %v150, %v401
    %v418 = vsub.f32 %v155, %v401
    %v419 = vsub.f32 %v160, %v401
    %v420 = vsub.f32 %v165, %v401
    %v421 = vsub.f32 %v170, %v401
    %v422 = vsub.f32 %v175, %v401
    %v423 = vsub.f32 %v180, %v401
    %v424 = vsub.f32 %v185, %v401
    %v425 = vsub.f32 %v190, %v401
    %v426 = vsub.f32 %v195, %v401
    %v427 = vsub.f32 %v200, %v401
    %v428 = vsub.f32 %v205, %v401
    %v429 = vsub.f32 %v210, %v401
    %v430 = vsub.f32 %v215, %v401
    %v431 = vsub.f32 %v220, %v401
    %v432 = vsub.f32 %v225, %v401
    %v433 = vsub.f32 %v230, %v401
    %v434 = vsub.f32 %v235, %v401
    %v435 = vsub.f32 %v240, %v401
    %v436 = vsub.f32 %v245, %v401
    %v437 = vsub.f32 %v250, %v401
    %v438 = vsub.f32 %v255, %v401
    %v439 = vsub.f32 %v260, %v401
    %v440 = vsub.f32 %v265, %v401
    %v441 = vsub.f32 %v270, %v401
    %v442 = vsub.f32 %v275, %v401
    %v443 = vsub.f32 %v280, %v401
    %v444 = vsub.f32 %v285, %v401
    %v445 = vsub.f32 %v290, %v401
    %v446 = vsub.f32 %v295, %v401
    %v447 = vsub.f32 %v300, %v401
    %v448 = vsub.f32 %v305, %v401
    %v449 = vsub.f32 %v310, %v401
    %v450 = vsub.f32 %v315, %v401
    %v451 = vsub.f32 %v320, %v401
    %v452 = vsub.f32 %v325, %v401
    %v453 = vsub.f32 %v330, %v401
    %v454 = vsub.f32 %v335, %v401
    %v455 = vsub.f32 %v340, %v401
    %v456 = vsub.f32 %v345, %v401
    %v457 = vsub.f32 %v350, %v401
    %v458 = vsub.f32 %v355, %v401
    %v459 = vsub.f32 %v360, %v401
    %v460 = vsub.f32 %v365, %v401
    %v461 = vsub.f32 %v370, %v401
    %v462 = vsub.f32 %v375, %v401
    %v463 = vsub.f32 %v380, %v401
    %v464 = vsub.f32 %v385, %v401
    %v465 = vsub.f32 %v390, %v401
    %v466 = vsub.f32 %v395, %v401
    %v467 = vmul.f32 %v403, -4.5
    %v468 = vmul.f32 %v404, -4.5
    %v469 = vmul.f32 %v405, -4.5
    %v470 = vmul.f32 %v406, -4.5
    %v471 = vmul.f32 %v407, -4.5
    %v472 = vmul.f32 %v408, -4.5
    %v473 = vmul.f32 %v409, -4.5
    %v474 = vmul.f32 %v410, -4.5
    %v475 = vmul.f32 %v411, -4.5
    %v476 = vmul.f32 %v412, -4.5
    %v477 = vmul.f32 %v413, -4.5
    %v478 = vmul.f32 %v414, -4.5
    %v479 = vmul.f32 %v415, -4.5
    %v480 = vmul.f32 %v416, -4.5
    %v481 = vmul.f32 %v417, -4.5
    %v482 = vmul.f32 %v418, -4.5
    %v483 = vmul.f32 %v419, -4.5
    %v484 = vmul.f32 %v420, -4.5
    %v485 = vmul.f32 %v421, -4.5
    %v486 = vmul.f32 %v422, -4.5
    %v487 = vmul.f32 %v423, -4.5
    %v488 = vmul.f32 %v424, -4.5
    %v489 = vmul.f32 %v425, -4.5
    %v490 = vmul.f32 %v426, -4.5
    %v491 = vmul.f32 %v427, -4.5
    %v492 = vmul.f32 %v428, -4.5
    %v493 = vmul.f32 %v429, -4.5
    %v494 = vmul.f32 %v430, -4.5
    %v495 = vmul.f32 %v431, -4.5
    %v496 = vmul.f32 %v432, -4.5
    %v497 = vmul.f32 %v433, -4.5
    %v498 = vmul.f32 %v434, -4.5
    %v499 = vmul.f32 %v435, -4.5
    %v500 = vmul.f32 %v436, -4.5
    %v501 = vmul.f32 %v437, -4.5
    %v502 = vmul.f32 %v438, -4.5
    %v503 = vmul.f32 %v439, -4.5
    %v504 = vmul.f32 %v440, -4.5
    %v505 = vmul.f32 %v441, -4.5
    %v506 = vmul.f32 %v442, -4.5
    %v507 = vmul.f32 %v443, -4.5
    %v508 = vmul.f32 %v444, -4.5
    %v509 = vmul.f32 %v445, -4.5
    %v510 = vmul.f32 %v446, -4.5
    %v511 = vmul.f32 %v447, -4.5
    %v512 = vmul.f32 %v448, -4.5
    %v513 = vmul.f32 %v449, -4.5
    %v514 = vmul.f32 %v450, -4.5
    %v515 = vmul.f32 %v451, -4.5
    %v516 = vmul.f32 %v452, -4.5
    %v517 = vmul.f32 %v453, -4.5
    %v518 = vmul.f32 %v454, -4.5
    %v519 = vmul.f32 %v455, -4.5
    %v520 = vmul.f32 %v456, -4.5
    %v521 = vmul.f32 %v457, -4.5
    %v522 = vmul.f32 %v458, -4.5
    %v523 = vmul.f32 %v459, -4.5
    %v524 = vmul.f32 %v460, -4.5
    %v525 = vmul.f32 %v461, -4.5
    %v526 = vmul.f32 %v462, -4.5
    %v527 = vmul.f32 %v463, -4.5
    %v528 = vmul.f32 %v464, -4.5
    %v529 = vmul.f32 %v465, -4.5
    %v530 = vmul.f32 %v466, -4.5
    %v531 = vmul.f32 %v467, %v403
    %v532 = vmul.f32 %v468, %v404
    %v533 = vmul.f32 %v469, %v405
    %v534 = vmul.f32 %v470, %v406
    %v535 = vmul.f32 %v471, %v407
    %v536 = vmul.f32 %v472, %v408
    %v537 = vmul.f32 %v473, %v409
    %v538 = vmul.f32 %v474, %v410
    %v539 = vmul.f32 %v475, %v411
    %v540 = vmul.f32 %v476, %v412
    %v541 = vmul.f32 %v477, %v413
    %v542 = vmul.f32 %v478, %v414
    %v543 = vmul.f32 %v479, %v415
    %v544 = vmul.f32 %v480, %v416
    %v545 = vmul.f32 %v481, %v417
    %v546 = vmul.f32 %v482, %v418
    %v547 = vmul.f32 %v483, %v419
    %v548 = vmul.f32 %v484, %v420
    %v549 = vmul.f32 %v485, %v421
    %v550 = vmul.f32 %v486, %v422
    %v551 = vmul.f32 %v487, %v423
    %v552 = vmul.f32 %v488, %v424
    %v553 = vmul.f32 %v489, %v425
    %v554 = vmul.f32 %v490, %v426
    %v555 = vmul.f32 %v491, %v427
    %v556 = vmul.f32 %v492, %v428
    %v557 = vmul.f32 %v493, %v429
    %v558 = vmul.f32 %v494, %v430
    %v559 = vmul.f32 %v495, %v431
    %v560 = vmul.f32 %v496, %v432
    %v561 = vmul.f32 %v497, %v433
    %v562 = vmul.f32 %v498, %v434
    %v563 = vmul.f32 %v499, %v435
    %v564 = vmul.f32 %v500, %v436
    %v565 = vmul.f32 %v501, %v437
    %v566 = vmul.f32 %v502, %v438
    %v567 = vmul.f32 %v503, %v439
    %v568 = vmul.f32 %v504, %v440
    %v569 = vmul.f32 %v505, %v441
    %v570 = vmul.f32 %v506, %v442
    %v571 = vmul.f32 %v507, %v443
    %v572 = vmul.f32 %v508, %v444
    %v573 = vmul.f32 %v509, %v445
    %v574 = vmul.f32 %v510, %v446
    %v575 = vmul.f32 %v511, %v447
    %v576 = vmul.f32 %v512, %v448
    %v577 = vmul.f32 %v513, %v449
    %v578 = vmul.f32 %v514, %v450
    %v579 = vmul.f32 %v515, %v451
    %v580 = vmul.f32 %v516, %v452
    %v581 = vmul.f32 %v517, %v453
    %v582 = vmul.f32 %v518, %v454
    %v583 = vmul.f32 %v519, %v455
    %v584 = vmul.f32 %v520, %v456
    %v585 = vmul.f32 %v521, %v457
    %v586 = vmul.f32 %v522, %v458
    %v587 = vmul.f32 %v523, %v459
    %v588 = vmul.f32 %v524, %v460
    %v589 = vmul.f32 %v525, %v461
    %v590 = vmul.f32 %v526, %v462
    %v591 = vmul.f32 %v527, %v463
    %v592 = vmul.f32 %v528, %v464
    %v593 = vmul.f32 %v529, %v465
    %v594 = vmul.f32 %v530, %v466
    %v595 = vmul.f32 %v531, 1.442695
    %v596 = vpow.pop %v595
    %v597 = vmul.f32 %v532, 1.442695
    %v598 = vpow.pop %v597
    %v599 = vmul.f32 %v533, 1.442695
    %v600 = vpow.pop %v599
    %v601 = vmul.f32 %v534, 1.442695
    %v602 = vpow.pop %v601
    %v603 = vmul.f32 %v535, 1.442695
    %v604 = vpow.pop %v603
    %v605 = vmul.f32 %v536, 1.442695
    %v606 = vpow.pop %v605
    %v607 = vmul.f32 %v537, 1.442695
    %v608 = vpow.pop %v607
    %v609 = vmul.f32 %v538, 1.442695
    %v610 = vpow.pop %v609
    %v611 = vmul.f32 %v539, 1.442695
    %v612 = vpow.pop %v611
    %v613 = vmul.f32 %v540, 1.442695
    %v614 = vpow.pop %v613
    %v615 = vmul.f32 %v541, 1.442695
    %v616 = vpow.pop %v615
    %v617 = vmul.f32 %v542, 1.442695
    %v618 = vpow.pop %v617
    %v619 = vmul.f32 %v543, 1.442695
    %v620 = vpow.pop %v619
    %v621 = vmul.f32 %v544, 1.442695
    %v622 = vpow.pop %v621
    %v623 = vmul.f32 %v545, 1.442695
    %v624 = vpow.pop %v623
    %v625 = vmul.f32 %v546, 1.442695
    %v626 = vpow.pop %v625
    %v627 = vmul.f32 %v547, 1.442695
    %v628 = vpow.pop %v627
    %v629 = vmul.f32 %v548, 1.442695
    %v630 = vpow.pop %v629
    %v631 = vmul.f32 %v549, 1.442695
    %v632 = vpow.pop %v631
    %v633 = vmul.f32 %v550, 1.442695
    %v634 = vpow.pop %v633
    %v635 = vmul.f32 %v551, 1.442695
    %v636 = vpow.pop %v635
    %v637 = vmul.f32 %v552, 1.442695
    %v638 = vpow.pop %v637
    %v639 = vmul.f32 %v553, 1.442695
    %v640 = vpow.pop %v639
    %v641 = vmul.f32 %v554, 1.442695
    %v642 = vpow.pop %v641
    %v643 = vmul.f32 %v555, 1.442695
    %v644 = vpow.pop %v643
    %v645 = vmul.f32 %v556, 1.442695
    %v646 = vpow.pop %v645
    %v647 = vmul.f32 %v557, 1.442695
    %v648 = vpow.pop %v647
    %v649 = vmul.f32 %v558, 1.442695
    %v650 = vpow.pop %v649
    %v651 = vmul.f32 %v559, 1.442695
    %v652 = vpow.pop %v651
    %v653 = vmul.f32 %v560, 1.442695
    %v654 = vpow.pop %v653
    %v655 = vmul.f32 %v561, 1.442695
    %v656 = vpow.pop %v655
    %v657 = vmul.f32 %v562, 1.442695
    %v658 = vpow.pop %v657
    %v659 = vmul.f32 %v563, 1.442695
    %v660 = vpow.pop %v659
    %v661 = vmul.f32 %v564, 1.442695
    %v662 = vpow.pop %v661
    %v663 = vmul.f32 %v565, 1.442695
    %v664 = vpow.pop %v663
    %v665 = vmul.f32 %v566, 1.442695
    %v666 = vpow.pop %v665
    %v667 = vmul.f32 %v567, 1.442695
    %v668 = vpow.pop %v667
    %v669 = vmul.f32 %v568, 1.442695
    %v670 = vpow.pop %v669
    %v671 = vmul.f32 %v569, 1.442695
    %v672 = vpow.pop %v671
    %v673 = vmul.f32 %v570, 1.442695
    %v674 = vpow.pop %v673
    %v675 = vmul.f32 %v571, 1.442695
    %v676 = vpow.pop %v675
    %v677 = vmul.f32 %v572, 1.442695
    %v678 = vpow.pop %v677
    %v679 = vmul.f32 %v573, 1.442695
    %v680 = vpow.pop %v679
    %v681 = vmul.f32 %v574, 1.442695
    %v682 = vpow.pop %v681
    %v683 = vmul.f32 %v575, 1.442695
    %v684 = vpow.pop %v683
    %v685 = vmul.f32 %v576, 1.442695
    %v686 = vpow.pop %v685
    %v687 = vmul.f32 %v577, 1.442695
    %v688 = vpow.pop %v687
    %v689 = vmul.f32 %v578, 1.442695
    %v690 = vpow.pop %v689
    %v691 = vmul.f32 %v579, 1.442695
    %v692 = vpow.pop %v691
    %v693 = vmul.f32 %v580, 1.442695
    %v694 = vpow.pop %v693
    %v695 = vmul.f32 %v581, 1.442695
    %v696 = vpow.pop %v695
    %v697 = vmul.f32 %v582, 1.442695
    %v698 = vpow.pop %v697
    %v699 = vmul.f32 %v583, 1.442695
    %v700 = vpow.pop %v699
    %v701 = vmul.f32 %v584, 1.442695
    %v702 = vpow.pop %v701
    %v703 = vmul.f32 %v585, 1.442695
    %v704 = vpow.pop %v703
    %v705 = vmul.f32 %v586, 1.442695
    %v706 = vpow.pop %v705
    %v707 = vmul.f32 %v587, 1.442695
    %v708 = vpow.pop %v707
    %v709 = vmul.f32 %v588, 1.442695
    %v710 = vpow.pop %v709
    %v711 = vmul.f32 %v589, 1.442695
    %v712 = vpow.pop %v711
    %v713 = vmul.f32 %v590, 1.442695
    %v714 = vpow.pop %v713
    %v715 = vmul.f32 %v591, 1.442695
    %v716 = vpow.pop %v715
    %v717 = vmul.f32 %v592, 1.442695
    %v718 = vpow.pop %v717
    %v719 = vmul.f32 %v593, 1.442695
    %v720 = vpow.pop %v719
    %v721 = vmul.f32 %v594, 1.442695
    %v722 = vpow.pop %v721
    %v723 = vpack.c.bf16 %v598, %v596
    %v724 = vpack.c.bf16 %v602, %v600
    %v725 = vpack.c.bf16 %v606, %v604
    %v726 = vpack.c.bf16 %v610, %v608
    %v727 = vpack.c.bf16 %v614, %v612
    %v728 = vpack.c.bf16 %v618, %v616
    %v729 = vpack.c.bf16 %v622, %v620
    %v730 = vpack.c.bf16 %v626, %v624
    %v731 = vpack.c.bf16 %v630, %v628
    %v732 = vpack.c.bf16 %v634, %v632
    %v733 = vpack.c.bf16 %v638, %v636
    %v734 = vpack.c.bf16 %v642, %v640
    %v735 = vpack.c.bf16 %v646, %v644
    %v736 = vpack.c.bf16 %v650, %v648
    %v737 = vpack.c.bf16 %v654, %v652
    %v738 = vpack.c.bf16 %v658, %v656
    %v739 = vpack.c.bf16 %v662, %v660
    %v740 = vpack.c.bf16 %v666, %v664
    %v741 = vpack.c.bf16 %v670, %v668
    %v742 = vpack.c.bf16 %v674, %v672
    %v743 = vpack.c.bf16 %v678, %v676
    %v744 = vpack.c.bf16 %v682, %v680
    %v745 = vpack.c.bf16 %v686, %v684
    %v746 = vpack.c.bf16 %v690, %v688
    %v747 = vpack.c.bf16 %v694, %v692
    %v748 = vpack.c.bf16 %v698, %v696
    %v749 = vpack.c.bf16 %v702, %v700
    %v750 = vpack.c.bf16 %v706, %v704
    %v751 = vpack.c.bf16 %v710, %v708
    %v752 = vpack.c.bf16 %v714, %v712
    %v753 = vpack.c.bf16 %v718, %v716
    %v754 = vpack.c.bf16 %v722, %v720
    %v787 = vunpack.c.l.b16 %v723
    %v788 = vunpack.c.h.b16 %v723
    %v789 = vunpack.c.l.b16 %v724
    %v790 = vunpack.c.h.b16 %v724
    %v791 = vunpack.c.l.b16 %v725
    %v792 = vunpack.c.h.b16 %v725
    %v793 = vunpack.c.l.b16 %v726
    %v794 = vunpack.c.h.b16 %v726
    %v795 = vunpack.c.l.b16 %v727
    %v796 = vunpack.c.h.b16 %v727
    %v797 = vunpack.c.l.b16 %v728
    %v798 = vunpack.c.h.b16 %v728
    %v799 = vunpack.c.l.b16 %v729
    %v800 = vunpack.c.h.b16 %v729
    %v801 = vunpack.c.l.b16 %v730
    %v802 = vunpack.c.h.b16 %v730
    %v803 = vunpack.c.l.b16 %v731
    %v804 = vunpack.c.h.b16 %v731
    %v805 = vunpack.c.l.b16 %v732
    %v806 = vunpack.c.h.b16 %v732
    %v807 = vunpack.c.l.b16 %v733
    %v808 = vunpack.c.h.b16 %v733
    %v809 = vunpack.c.l.b16 %v734
    %v810 = vunpack.c.h.b16 %v734
    %v811 = vunpack.c.l.b16 %v735
    %v812 = vunpack.c.h.b16 %v735
    %v813 = vunpack.c.l.b16 %v736
    %v814 = vunpack.c.h.b16 %v736
    %v815 = vunpack.c.l.b16 %v737
    %v816 = vunpack.c.h.b16 %v737
    %v817 = vunpack.c.l.b16 %v738
    %v818 = vunpack.c.h.b16 %v738
    %v819 = vunpack.c.l.b16 %v739
    %v820 = vunpack.c.h.b16 %v739
    %v821 = vunpack.c.l.b16 %v740
    %v822 = vunpack.c.h.b16 %v740
    %v823 = vunpack.c.l.b16 %v741
    %v824 = vunpack.c.h.b16 %v741
    %v825 = vunpack.c.l.b16 %v742
    %v826 = vunpack.c.h.b16 %v742
    %v827 = vunpack.c.l.b16 %v743
    %v828 = vunpack.c.h.b16 %v743
    %v829 = vunpack.c.l.b16 %v744
    %v830 = vunpack.c.h.b16 %v744
    %v831 = vunpack.c.l.b16 %v745
    %v832 = vunpack.c.h.b16 %v745
    %v833 = vunpack.c.l.b16 %v746
    %v834 = vunpack.c.h.b16 %v746
    %v835 = vunpack.c.l.b16 %v747
    %v836 = vunpack.c.h.b16 %v747
    %v837 = vunpack.c.l.b16 %v748
    %v838 = vunpack.c.h.b16 %v748
    %v839 = vunpack.c.l.b16 %v749
    %v840 = vunpack.c.h.b16 %v749
    %v841 = vunpack.c.l.b16 %v750
    %v842 = vunpack.c.h.b16 %v750
    %v843 = vunpack.c.l.b16 %v751
    %v844 = vunpack.c.h.b16 %v751
    %v845 = vunpack.c.l.b16 %v752
    %v846 = vunpack.c.h.b16 %v752
    %v847 = vunpack.c.l.b16 %v753
    %v848 = vunpack.c.h.b16 %v753
    %v849 = vunpack.c.l.b16 %v754
    %v850 = vunpack.c.h.b16 %v754
    %v851 = vpack.c.b16 %v787, %v787
    %v852 = vpack.c.b16 %v788, %v788
    %v853 = vpack.c.b16 %v789, %v789
    %v854 = vpack.c.b16 %v790, %v790
    %v855 = vpack.c.b16 %v791, %v791
    %v856 = vpack.c.b16 %v792, %v792
    %v857 = vpack.c.b16 %v793, %v793
    %v858 = vpack.c.b16 %v794, %v794
    %v859 = vpack.c.b16 %v795, %v795
    %v860 = vpack.c.b16 %v796, %v796
    %v861 = vpack.c.b16 %v797, %v797
    %v862 = vpack.c.b16 %v798, %v798
    %v863 = vpack.c.b16 %v799, %v799
    %v864 = vpack.c.b16 %v800, %v800
    %v865 = vpack.c.b16 %v801, %v801
    %v866 = vpack.c.b16 %v802, %v802
    %v867 = vpack.c.b16 %v803, %v803
    %v868 = vpack.c.b16 %v804, %v804
    %v869 = vpack.c.b16 %v805, %v805
    %v870 = vpack.c.b16 %v806, %v806
    %v871 = vpack.c.b16 %v807, %v807
    %v872 = vpack.c.b16 %v808, %v808
    %v873 = vpack.c.b16 %v809, %v809
    %v874 = vpack.c.b16 %v810, %v810
    %v875 = vpack.c.b16 %v811, %v811
    %v876 = vpack.c.b16 %v812, %v812
    %v877 = vpack.c.b16 %v813, %v813
    %v878 = vpack.c.b16 %v814, %v814
    %v879 = vpack.c.b16 %v815, %v815
    %v880 = vpack.c.b16 %v816, %v816
    %v881 = vpack.c.b16 %v817, %v817
    %v882 = vpack.c.b16 %v818, %v818
    %v883 = vpack.c.b16 %v819, %v819
    %v884 = vpack.c.b16 %v820, %v820
    %v885 = vpack.c.b16 %v821, %v821
    %v886 = vpack.c.b16 %v822, %v822
    %v887 = vpack.c.b16 %v823, %v823
    %v888 = vpack.c.b16 %v824, %v824
    %v889 = vpack.c.b16 %v825, %v825
    %v890 = vpack.c.b16 %v826, %v826
    %v891 = vpack.c.b16 %v827, %v827
    %v892 = vpack.c.b16 %v828, %v828
    %v893 = vpack.c.b16 %v829, %v829
    %v894 = vpack.c.b16 %v830, %v830
    %v895 = vpack.c.b16 %v831, %v831
    %v896 = vpack.c.b16 %v832, %v832
    %v897 = vpack.c.b16 %v833, %v833
    %v898 = vpack.c.b16 %v834, %v834
    %v899 = vpack.c.b16 %v835, %v835
    %v900 = vpack.c.b16 %v836, %v836
    %v901 = vpack.c.b16 %v837, %v837
    %v902 = vpack.c.b16 %v838, %v838
    %v903 = vpack.c.b16 %v839, %v839
    %v904 = vpack.c.b16 %v840, %v840
    %v905 = vpack.c.b16 %v841, %v841
    %v906 = vpack.c.b16 %v842, %v842
    %v907 = vpack.c.b16 %v843, %v843
    %v908 = vpack.c.b16 %v844, %v844
    %v909 = vpack.c.b16 %v845, %v845
    %v910 = vpack.c.b16 %v846, %v846
    %v911 = vpack.c.b16 %v847, %v847
    %v912 = vpack.c.b16 %v848, %v848
    %v913 = vpack.c.b16 %v849, %v849
    %v914 = vpack.c.b16 %v850, %v850
    %979 = vst [vmem:[#allocation2] sm:$0xf] %v851
    %980 = vst [vmem:[#allocation2 + $0x4] sm:$0xf] %v852
    %981 = vst [vmem:[#allocation2 + $0x8] sm:$0xf] %v853
    %982 = vst [vmem:[#allocation2 + $0xc] sm:$0xf] %v854
    %983 = vst [vmem:[#allocation2 + $0x10] sm:$0xf] %v855
    %984 = vst [vmem:[#allocation2 + $0x14] sm:$0xf] %v856
    %985 = vst [vmem:[#allocation2 + $0x18] sm:$0xf] %v857
    %986 = vst [vmem:[#allocation2 + $0x1c] sm:$0xf] %v858
    %987 = vst [vmem:[#allocation2 + $0x20] sm:$0xf] %v859
    %988 = vst [vmem:[#allocation2 + $0x24] sm:$0xf] %v860
    %989 = vst [vmem:[#allocation2 + $0x28] sm:$0xf] %v861
    %990 = vst [vmem:[#allocation2 + $0x2c] sm:$0xf] %v862
    %991 = vst [vmem:[#allocation2 + $0x30] sm:$0xf] %v863
    %992 = vst [vmem:[#allocation2 + $0x34] sm:$0xf] %v864
    %993 = vst [vmem:[#allocation2 + $0x38] sm:$0xf] %v865
    %994 = vst [vmem:[#allocation2 + $0x3c] sm:$0xf] %v866
    %995 = vst [vmem:[#allocation2 + $0x40] sm:$0xf] %v867
    %996 = vst [vmem:[#allocation2 + $0x44] sm:$0xf] %v868
    %997 = vst [vmem:[#allocation2 + $0x48] sm:$0xf] %v869
    %998 = vst [vmem:[#allocation2 + $0x4c] sm:$0xf] %v870
    %999 = vst [vmem:[#allocation2 + $0x50] sm:$0xf] %v871
    %1000 = vst [vmem:[#allocation2 + $0x54] sm:$0xf] %v872
    %1001 = vst [vmem:[#allocation2 + $0x58] sm:$0xf] %v873
    %1002 = vst [vmem:[#allocation2 + $0x5c] sm:$0xf] %v874
    %1003 = vst [vmem:[#allocation2 + $0x60] sm:$0xf] %v875
    %1004 = vst [vmem:[#allocation2 + $0x64] sm:$0xf] %v876
    %1005 = vst [vmem:[#allocation2 + $0x68] sm:$0xf] %v877
    %1006 = vst [vmem:[#allocation2 + $0x6c] sm:$0xf] %v878
    %1007 = vst [vmem:[#allocation2 + $0x70] sm:$0xf] %v879
    %1008 = vst [vmem:[#allocation2 + $0x74] sm:$0xf] %v880
    %1009 = vst [vmem:[#allocation2 + $0x78] sm:$0xf] %v881
    %1010 = vst [vmem:[#allocation2 + $0x7c] sm:$0xf] %v882
    %1011 = vst [vmem:[#allocation2 + $0x80] sm:$0xf] %v883
    %1012 = vst [vmem:[#allocation2 + $0x84] sm:$0xf] %v884
    %1013 = vst [vmem:[#allocation2 + $0x88] sm:$0xf] %v885
    %1014 = vst [vmem:[#allocation2 + $0x8c] sm:$0xf] %v886
    %1015 = vst [vmem:[#allocation2 + $0x90] sm:$0xf] %v887
    %1016 = vst [vmem:[#allocation2 + $0x94] sm:$0xf] %v888
    %1017 = vst [vmem:[#allocation2 + $0x98] sm:$0xf] %v889
    %1018 = vst [vmem:[#allocation2 + $0x9c] sm:$0xf] %v890
    %1019 = vst [vmem:[#allocation2 + $0xa0] sm:$0xf] %v891
    %1020 = vst [vmem:[#allocation2 + $0xa4] sm:$0xf] %v892
    %1021 = vst [vmem:[#allocation2 + $0xa8] sm:$0xf] %v893
    %1022 = vst [vmem:[#allocation2 + $0xac] sm:$0xf] %v894
    %1023 = vst [vmem:[#allocation2 + $0xb0] sm:$0xf] %v895
    %1024 = vst [vmem:[#allocation2 + $0xb4] sm:$0xf] %v896
    %1025 = vst [vmem:[#allocation2 + $0xb8] sm:$0xf] %v897
    %1026 = vst [vmem:[#allocation2 + $0xbc] sm:$0xf] %v898
    %1027 = vst [vmem:[#allocation2 + $0xc0] sm:$0xf] %v899
    %1028 = vst [vmem:[#allocation2 + $0xc4] sm:$0xf] %v900
    %1029 = vst [vmem:[#allocation2 + $0xc8] sm:$0xf] %v901
    %1030 = vst [vmem:[#allocation2 + $0xcc] sm:$0xf] %v902
    %1031 = vst [vmem:[#allocation2 + $0xd0] sm:$0xf] %v903
    %1032 = vst [vmem:[#allocation2 + $0xd4] sm:$0xf] %v904
    %1033 = vst [vmem:[#allocation2 + $0xd8] sm:$0xf] %v905
    %1034 = vst [vmem:[#allocation2 + $0xdc] sm:$0xf] %v906
    %1035 = vst [vmem:[#allocation2 + $0xe0] sm:$0xf] %v907
    %1036 = vst [vmem:[#allocation2 + $0xe4] sm:$0xf] %v908
    %1037 = vst [vmem:[#allocation2 + $0xe8] sm:$0xf] %v909
    %1038 = vst [vmem:[#allocation2 + $0xec] sm:$0xf] %v910
    %1039 = vst [vmem:[#allocation2 + $0xf0] sm:$0xf] %v911
    %1040 = vst [vmem:[#allocation2 + $0xf4] sm:$0xf] %v912
    %1041 = vst [vmem:[#allocation2 + $0xf8] sm:$0xf] %v913
    %1042 = vst [vmem:[#allocation2 + $0xfc] sm:$0xf] %v914
    // Predicated region
    $region10: #{tpu_custom_call.1} parent=1 // pred_check
      _
    $region11: #{tpu_custom_call.1} parent=1 // pred_check_branch
      %1044 = sbr.rel (0) target = $region13
    $region12: #{tpu_custom_call.1} parent=1 // pred_region
      %s1046 = ssub.s32 4096, 4096
      %1047 = vsyncadd [#allocation3], %s1046
      %s1048 = sshll.u32 [#allocation2], 4
      %s1049 = int_to_ptr.vmem [resolvable:$true] %s1048
      %1054 = dma.vmem_to_hbm [thread:$0]  %s1049, 4096, %s2, [#allocation3], 64, 64, 4
    $region13: #{tpu_custom_call.1} parent=1 // pred_fallthru
      _
    // Predicated region
    $region14: #{tpu_custom_call.1} parent=1 // pred_check
      _
    $region15: #{tpu_custom_call.1} parent=1 // pred_check_branch
      %1056 = sbr.rel (0) target = $region17
    $region16: #{tpu_custom_call.1} parent=1 // pred_region
      %1057 = dma.done [#allocation3], 4096
    $region17: #{tpu_custom_call.1} parent=1 // pred_fallthru
      _
    %1058 = vsyncpa [#allocation3], 1

</llo_original>
